<compile_context>
chip_gen: v7x
topology: tpu7x:2x2x1
jax: 0.10.0
libtpu: 0.0.40
codegen_flags: <defaults>
</compile_context>

<pallas_src>
import math

import jax
import jax.numpy as jnp
from jax.experimental import pallas as pl
from jax.experimental.pallas import tpu as pltpu


def _linear_layer_kernel(x_ref, w_ref, b_ref, o_ref):
    # x_ref: (tm, Din) rows for one (branch, row-tile) step -- CLS already dropped.
    # w_ref: (Dout, Din) PyTorch nn.Linear layout; contract last dims (NT matmul),
    #        so no transposed weight copy is ever created.
    acc = jax.lax.dot_general(
        x_ref[...], w_ref[...],
        dimension_numbers=(((1,), (1,)), ((), ())),   # x[..,Din] . w[..,Din]^T
        preferred_element_type=jnp.float32,           # f32 MXU accumulate
    )
    o_ref[...] = (acc + b_ref[...]).astype(o_ref.dtype)   # fused bias add (VPU)


def _choose_row_tile(m, max_tile=512):
    """Largest multiple-of-8 divisor of m that is <= max_tile, else the full m."""
    if m <= max_tile:
        return m
    for t in range(max_tile - (max_tile % 8), 7, -8):
        if m % t == 0:
            return t
    return m  # fall back to a single full-row block (still correct, may be VMEM-heavy)


def linear_layer_forward(tokens, weights, biases):
    """tokens : list of k arrays (B, S, dim_in)
       weights: list of k arrays (dim_out, dim_in)  (PyTorch nn.Linear layout)
       biases : list of k arrays (dim_out,)
       returns: list of k arrays (B, S-1, dim_out)"""
    k = len(tokens)
    assert k == len(weights) == len(biases)
    for t in tokens:
        # LinearLayer.forward asserts every token tensor is 3-D.
        assert t.ndim == 3

    B, S, Din = tokens[0].shape
    Dout = weights[0].shape[0]
    M = B * (S - 1)

    # Drop the CLS row before the kernel and flatten (B, S-1) -> M rows per branch.
    x = jnp.stack([t[:, 1:, :] for t in tokens]).reshape(k, M, Din)   # (k, M, Din)
    w = jnp.stack(weights)                                            # (k, Dout, Din)
    b = jnp.stack([bi.reshape(1, -1) for bi in biases])               # (k, 1, Dout)

    tm = _choose_row_tile(M)
    mt = M // tm

    out = pl.pallas_call(
        _linear_layer_kernel,
        out_shape=jax.ShapeDtypeStruct((k, M, Dout), x.dtype),
        grid=(k, mt),
        in_specs=[
            # one (tm, Din) row tile per (branch, row-tile) step
            pl.BlockSpec((None, tm, Din), lambda i, j: (i, j, 0)),
            # weight / bias depend only on the branch index (slow axis) -> they are
            # not re-fetched across the inner row-tile axis.
            pl.BlockSpec((None, Dout, Din), lambda i, j: (i, 0, 0)),
            pl.BlockSpec((None, 1, Dout), lambda i, j: (i, 0, 0)),
        ],
        out_specs=pl.BlockSpec((None, tm, Dout), lambda i, j: (i, j, 0)),
        compiler_params=pltpu.CompilerParams(
            # Both grid axes are independent (no reduction axis).
            # On v7x, switching the first axis to pltpu.CORE_PARALLEL shards the
            # branches across the two TensorCores.
            dimension_semantics=("parallel", "parallel"),
        ),
    )(x, w, b)

    # TODO(synk): for very large Din/Dout add N (Dout) tiling and a K-reduction
    # grid axis with an f32 VMEM accumulator + pl.when init/finalize (and bf16
    # operands on v6e/v7x if numerics permit); set vmem_limit_bytes when sizing
    # for v7x's 64 MiB VMEM.
    return [out[i].reshape(B, S - 1, Dout) for i in range(k)]


def _reference(tokens, weights, biases):
    hp = jax.lax.Precision.HIGHEST
    return [
        jnp.matmul(t[:, 1:, :], w.T, precision=hp) + bi
        for t, w, bi in zip(tokens, weights, biases)
    ]


if __name__ == "__main__":
    # Small shapes consistent with the module: k=2 branches, batch=2, seq=8,
    # dim_in=32, dim_out=128 (lane-dense output).
    K, B, S, DIN, DOUT = 2, 2, 8, 32, 128

    key = jax.random.PRNGKey(0)
    keys = jax.random.split(key, 3 * K)

    tokens, weights, biases = [], [], []
    bound = 1.0 / math.sqrt(DIN)   # PyTorch nn.Linear default init bound
    for i in range(K):
        tokens.append(jax.random.normal(keys[3 * i], (B, S, DIN), jnp.float32))
        weights.append(jax.random.uniform(keys[3 * i + 1], (DOUT, DIN), jnp.float32,
                                          -bound, bound))
        biases.append(jax.random.uniform(keys[3 * i + 2], (DOUT,), jnp.float32,
                                         -bound, bound))

    outs = linear_layer_forward(tokens, weights, biases)
    outs = jax.block_until_ready(outs)

    refs = _reference(tokens, weights, biases)
    for o, r in zip(outs, refs):
        assert o.shape == (B, S - 1, DOUT)
        assert jnp.allclose(o, r, atol=1e-4, rtol=1e-4)

    print("KERNEL_OK")
</pallas_src>

<mosaic_0001>
module attributes {stable_mosaic.version = 11 : i64} {
  func.func @_linear_layer_kernel(%arg0: i32, %arg1: i32, %arg2: memref<1x14x32xf32, #tpu.memory_space<vmem>>, %arg3: memref<1x128x32xf32, #tpu.memory_space<vmem>>, %arg4: memref<1x1x128xf32, #tpu.memory_space<vmem>>, %arg5: memref<1x14x128xf32, #tpu.memory_space<vmem>>) attributes {dimension_semantics = [#tpu.dimension_semantics<parallel>, #tpu.dimension_semantics<parallel>], iteration_bounds = array<i64: 2, 1>, scalar_prefetch = 0 : i64, scratch_operands = 0 : i64, tpu.core_type = #tpu.core_type<tc>, window_params = [{transform_indices = @transform_0, window_bounds = array<i64: 1, 14, 32>}, {transform_indices = @transform_1, window_bounds = array<i64: 1, 128, 32>}, {transform_indices = @transform_2, window_bounds = array<i64: 1, 1, 128>}, {transform_indices = @transform_3, window_bounds = array<i64: 1, 14, 128>}]} {
    %c0 = arith.constant 0 : index
    %c0_0 = arith.constant 0 : index
    %c0_1 = arith.constant 0 : index
    %0 = vector.load %arg2[%c0, %c0_0, %c0_1] : memref<1x14x32xf32, #tpu.memory_space<vmem>>, vector<1x14x32xf32>
    %1 = vector.shape_cast %0 : vector<1x14x32xf32> to vector<14x32xf32>
    %c0_2 = arith.constant 0 : index
    %c0_3 = arith.constant 0 : index
    %c0_4 = arith.constant 0 : index
    %2 = vector.load %arg3[%c0_2, %c0_3, %c0_4] : memref<1x128x32xf32, #tpu.memory_space<vmem>>, vector<1x128x32xf32>
    %3 = vector.shape_cast %2 : vector<1x128x32xf32> to vector<128x32xf32>
    %cst = arith.constant dense<0.000000e+00> : vector<14x128xf32>
    %4 = tpu.matmul %1, %3, %cst {dimension_numbers = #tpu.dot_dimension_numbers<[1], [1], [0], [0], [0, 0, 1, 0], [], []>} : vector<14x32xf32>, vector<128x32xf32>, vector<14x128xf32> -> vector<14x128xf32>
    %c0_5 = arith.constant 0 : index
    %c0_6 = arith.constant 0 : index
    %c0_7 = arith.constant 0 : index
    %5 = vector.load %arg4[%c0_5, %c0_6, %c0_7] : memref<1x1x128xf32, #tpu.memory_space<vmem>>, vector<1x1x128xf32>
    %6 = vector.shape_cast %5 : vector<1x1x128xf32> to vector<1x128xf32>
    %7 = vector.broadcast %6 : vector<1x128xf32> to vector<14x128xf32>
    %8 = arith.addf %4, %7 : vector<14x128xf32>
    %c0_8 = arith.constant 0 : index
    %c0_9 = arith.constant 0 : index
    %c0_10 = arith.constant 0 : index
    %9 = vector.load %arg5[%c0_8, %c0_9, %c0_10] : memref<1x14x128xf32, #tpu.memory_space<vmem>>, vector<1x14x128xf32>
    %10 = vector.shape_cast %9 : vector<1x14x128xf32> to vector<14x128xf32>
    %11 = vector.shape_cast %8 : vector<14x128xf32> to vector<1x14x128xf32>
    tpu.vector_store %arg5[%c0_8, %c0_9, %c0_10], %11 {strides = array<i32>} : memref<1x14x128xf32, #tpu.memory_space<vmem>>, vector<1x14x128xf32>,
    return
  }
  func.func @transform_0(%arg0: i32, %arg1: i32) -> (i32, i32, i32) {
    %c0_i32 = arith.constant 0 : i32
    %c0_i32_0 = arith.constant 0 : i32
    return %arg0, %arg1, %c0_i32 : i32, i32, i32
  }
  func.func @transform_1(%arg0: i32, %arg1: i32) -> (i32, i32, i32) {
    %c0_i32 = arith.constant 0 : i32
    %c0_i32_0 = arith.constant 0 : i32
    %c0_i32_1 = arith.constant 0 : i32
    return %arg0, %c0_i32, %c0_i32_0 : i32, i32, i32
  }
  func.func @transform_2(%arg0: i32, %arg1: i32) -> (i32, i32, i32) {
    %c0_i32 = arith.constant 0 : i32
    %c0_i32_0 = arith.constant 0 : i32
    %c0_i32_1 = arith.constant 0 : i32
    return %arg0, %c0_i32, %c0_i32_0 : i32, i32, i32
  }
  func.func @transform_3(%arg0: i32, %arg1: i32) -> (i32, i32, i32) {
    %c0_i32 = arith.constant 0 : i32
    %c0_i32_0 = arith.constant 0 : i32
    return %arg0, %arg1, %c0_i32 : i32, i32, i32
  }
}

</mosaic_0001>

<llo_original>
// kernel: tpu_custom_call.1
$region0: #{tpu_custom_call.1}
  #allocation0 [shape = 'u32[]', space=smem, size = 0x4, offset = 0x4, fixed_abs, tag = 'smem constant byte address 0x4 - core index']
  #allocation1 [shape = 'u32[144,128]{1,0:T(1,128)}', space=vmem, size = 0x12000, scoped, tag = 'internal scratch']
  %s0 = inlined_call_operand.vmem [shape: f32[2,14,32], index: 0, kind: input, shape index: {}]
  %s1 = inlined_call_operand.vmem [shape: f32[2,128,32], index: 1, kind: input, shape index: {}]
  %s2 = inlined_call_operand.vmem [shape: f32[2,1,128], index: 2, kind: input, shape index: {}]
  %s3 = inlined_call_operand.vmem [shape: f32[2,14,128], index: 3, kind: output, shape index: {}]
  %s4 = sld [smem:[#allocation0]]
  $region45: #{tpu_custom_call.1} parent=0
    _
  %s6 = ssub.s32 1, %s4
  %s7 = scalar_select 0, %s6, %s4
  loop: start=0, step=1, limit=4
  $region2: #{tpu_custom_call.1} parent=0 // loop_pre_header
    _
  $region3: #{tpu_custom_call.1} parent=0 // loop_header
    %s9 = sphi 0, %s13
    %p10 = scmp.ge.s32.totalorder %s9, 4
    %s16 = sphi 0, %s28
    %s17 = sphi 0, %s24
    %s18 = sphi 0, %s16
    %s19 = sphi 0, %s17
    %s20 = sphi 0, %s18
    %s21 = sphi 0, %s19
    %s33 = sphi 0, %s35
    %s36 = sphi 0, %s33
    %s37 = sphi 0, %s36
    %s53 = sphi 0, %s37
    %s59 = sphi 0, %s61
    %s62 = sphi 0, %s59
    %s63 = sphi 0, %s62
    %s79 = sphi 0, %s63
    %s85 = sphi 0, %s87
    %s88 = sphi 0, %s85
    %s89 = sphi 0, %s88
    %s105 = sphi 0, %s89
    %s113 = sphi 0, %s115
    %s116 = sphi 0, %s113
    %s117 = sphi 0, %s116
    %s133 = sphi 0, %s117
  $region4: #{tpu_custom_call.1} parent=0 // loop_header_branch
    %12 = sbr.rel (%p10) target = $region8
  $region5: #{tpu_custom_call.1} parent=0 // loop_body
    %s14 = ssub.s32 %s9, 1
    %s15 = ssub.s32 %s9, 2
    %s22 = sadd.s32 1, %s17
    %p23 = scmp.ge.s32.totalorder %s22, 1
    %s24 = scalar_select %p23, 0, %s22
    %s25 = sadd.s32 1, %s16
    %s26 = scalar_select %p23, %s25, %s16
    %p27 = scmp.ge.s32.totalorder %s26, 2
    %s28 = scalar_select %p27, 0, %s26
    %s29 = ssub.s32 %s16, %s28
    %s30 = ssub.s32 %s17, %s24
    %s31 = sor.u32 %s29, %s30
    %p32 = scmp.eq.s32.totalorder %s31, 0
    %s34 = sadd.s32 %s33, 1
    %s35 = scalar_select %p32, %s33, %s34
    %p38 = pneg %p32
    %p39 = scmp.eq.s32.totalorder %s9, 1
    %p40 = por %p38, %p39
    %p41 = scmp.ne.s32.totalorder %s33, %s36
    %p42 = scmp.eq.s32.totalorder %s9, 0
    %p43 = por %p41, %p42
    %p44 = scmp.ne.s32.totalorder %s33, %s36
    %p45 = scmp.eq.s32.totalorder %s14, 1
    %p46 = por %p44, %p45
    %p47 = scmp.ne.s32.totalorder %s36, %s37
    %p48 = scmp.eq.s32.totalorder %s14, 0
    %p49 = por %p47, %p48
    %p50 = scmp.ne.s32.totalorder %s36, %s37
    %p51 = scmp.eq.s32.totalorder %s15, 1
    %p52 = por %p50, %p51
    %p54 = scmp.ne.s32.totalorder %s37, %s53
    %p55 = scmp.eq.s32.totalorder %s15, 0
    %p56 = por %p54, %p55
    %s57 = ssub.s32 %s16, %s28
    %p58 = scmp.eq.s32.totalorder %s57, 0
    %s60 = sadd.s32 %s59, 1
    %s61 = scalar_select %p58, %s59, %s60
    %p64 = pneg %p58
    %p65 = scmp.eq.s32.totalorder %s9, 1
    %p66 = por %p64, %p65
    %p67 = scmp.ne.s32.totalorder %s59, %s62
    %p68 = scmp.eq.s32.totalorder %s9, 0
    %p69 = por %p67, %p68
    %p70 = scmp.ne.s32.totalorder %s59, %s62
    %p71 = scmp.eq.s32.totalorder %s14, 1
    %p72 = por %p70, %p71
    %p73 = scmp.ne.s32.totalorder %s62, %s63
    %p74 = scmp.eq.s32.totalorder %s14, 0
    %p75 = por %p73, %p74
    %p76 = scmp.ne.s32.totalorder %s62, %s63
    %p77 = scmp.eq.s32.totalorder %s15, 1
    %p78 = por %p76, %p77
    %p80 = scmp.ne.s32.totalorder %s63, %s79
    %p81 = scmp.eq.s32.totalorder %s15, 0
    %p82 = por %p80, %p81
    %s83 = ssub.s32 %s16, %s28
    %p84 = scmp.eq.s32.totalorder %s83, 0
    %s86 = sadd.s32 %s85, 1
    %s87 = scalar_select %p84, %s85, %s86
    %p90 = pneg %p84
    %p91 = scmp.eq.s32.totalorder %s9, 1
    %p92 = por %p90, %p91
    %p93 = scmp.ne.s32.totalorder %s85, %s88
    %p94 = scmp.eq.s32.totalorder %s9, 0
    %p95 = por %p93, %p94
    %p96 = scmp.ne.s32.totalorder %s85, %s88
    %p97 = scmp.eq.s32.totalorder %s14, 1
    %p98 = por %p96, %p97
    %p99 = scmp.ne.s32.totalorder %s88, %s89
    %p100 = scmp.eq.s32.totalorder %s14, 0
    %p101 = por %p99, %p100
    %p102 = scmp.ne.s32.totalorder %s88, %s89
    %p103 = scmp.eq.s32.totalorder %s15, 1
    %p104 = por %p102, %p103
    %p106 = scmp.ne.s32.totalorder %s89, %s105
    %p107 = scmp.eq.s32.totalorder %s15, 0
    %p108 = por %p106, %p107
    %s109 = ssub.s32 %s16, %s28
    %s110 = ssub.s32 %s17, %s24
    %s111 = sor.u32 %s109, %s110
    %p112 = scmp.eq.s32.totalorder %s111, 0
    %s114 = sadd.s32 %s113, 1
    %s115 = scalar_select %p112, %s113, %s114
    %p118 = pneg %p112
    %p119 = scmp.eq.s32.totalorder %s9, 1
    %p120 = por %p118, %p119
    %p121 = scmp.ne.s32.totalorder %s113, %s116
    %p122 = scmp.eq.s32.totalorder %s9, 0
    %p123 = por %p121, %p122
    %p124 = scmp.ne.s32.totalorder %s113, %s116
    %p125 = scmp.eq.s32.totalorder %s14, 1
    %p126 = por %p124, %p125
    %p127 = scmp.ne.s32.totalorder %s116, %s117
    %p128 = scmp.eq.s32.totalorder %s14, 0
    %p129 = por %p127, %p128
    %p130 = scmp.ne.s32.totalorder %s116, %s117
    %p131 = scmp.eq.s32.totalorder %s15, 1
    %p132 = por %p130, %p131
    %p134 = scmp.ne.s32.totalorder %s117, %s133
    %p135 = scmp.eq.s32.totalorder %s15, 0
    %p136 = por %p134, %p135
    %p137 = scmp.le.s32.totalorder 1, %s9
    %p138 = scmp.lt.s32.totalorder %s9, 3
    %p139 = pnand %p137, %p138
    %p140 = pneg %p139
    // Predicated region
    $region9: #{tpu_custom_call.1} parent=5 // pred_check
      _
    $region10: #{tpu_custom_call.1} parent=5 // pred_check_branch
      %142 = sbr.rel (%p139) target = $region12
    $region11: #{tpu_custom_call.1} parent=5 // pred_region
      %s143 = ssub.s32 %s9, 1
    $region12: #{tpu_custom_call.1} parent=5 // pred_fallthru
      _
    %p144 = scmp.lt.s32.totalorder %s9, 2
    // Predicated region
    $region13: #{tpu_custom_call.1} parent=5 // pred_check
      %p145 = pneg %p144
    $region14: #{tpu_custom_call.1} parent=5 // pred_check_branch
      %147 = sbr.rel (%p145) target = $region16
    $region15: #{tpu_custom_call.1} parent=5 // pred_region
      // Predicated region
      $region17: #{tpu_custom_call.1} parent=15 // pred_check
        %p148 = pneg %p43
      $region18: #{tpu_custom_call.1} parent=15 // pred_check_branch
        %150 = sbr.rel (%p148) target = $region20
      $region19: #{tpu_custom_call.1} parent=15 // pred_region
        %s151 = smul.u32 2, %s17
        %p152 = scmp.lt.s32.totalorder %s16, 1
        %s153 = scalar_select %p152, %s16, 1
        %p154 = scmp.lt.s32.totalorder %s151, 1
        %s155 = scalar_select %p154, %s151, 1
        %s156 = smul.addr %s153, 2
        %s157 = sadd.s32 %s155, %s156
        %s158 = smul.addr %s157, 8
        %s159 = scalar_lea.vmem %s0, %s158
        %s160 = smul.u32 2, %s17
      $region20: #{tpu_custom_call.1} parent=15 // pred_fallthru
        _
      // Predicated region
      $region21: #{tpu_custom_call.1} parent=15 // pred_check
        %p161 = pneg %p69
      $region22: #{tpu_custom_call.1} parent=15 // pred_check_branch
        %163 = sbr.rel (%p161) target = $region24
      $region23: #{tpu_custom_call.1} parent=15 // pred_region
        %p164 = scmp.lt.s32.totalorder %s16, 1
        %s165 = scalar_select %p164, %s16, 1
        %s166 = smul.addr %s165, 16
        %s167 = smul.addr %s166, 8
        %s168 = scalar_lea.vmem %s1, %s167
      $region24: #{tpu_custom_call.1} parent=15 // pred_fallthru
        _
      // Predicated region
      $region25: #{tpu_custom_call.1} parent=15 // pred_check
        %p169 = pneg %p95
      $region26: #{tpu_custom_call.1} parent=15 // pred_check_branch
        %171 = sbr.rel (%p169) target = $region28
      $region27: #{tpu_custom_call.1} parent=15 // pred_region
        %p172 = scmp.lt.s32.totalorder %s16, 1
        %s173 = scalar_select %p172, %s16, 1
        %s174 = scalar_lea.vmem %s2, %s173
      $region28: #{tpu_custom_call.1} parent=15 // pred_fallthru
        _
    $region16: #{tpu_custom_call.1} parent=5 // pred_fallthru
      _
    %p175 = scmp.le.s32.totalorder 1, %s9
    %p176 = scmp.lt.s32.totalorder %s9, 3
    %p177 = pnand %p175, %p176
    %p178 = pneg %p177
    // Predicated region
    $region29: #{tpu_custom_call.1} parent=5 // pred_check
      _
    $region30: #{tpu_custom_call.1} parent=5 // pred_check_branch
      %180 = sbr.rel (%p177) target = $region32
    $region31: #{tpu_custom_call.1} parent=5 // pred_region
      %s181 = ssub.s32 %s9, 1
      %s182 = smul.u32 2, %s19
      %p183 = scmp.lt.s32.totalorder %s18, 1
      %s184 = scalar_select %p183, %s18, 1
      %p185 = scmp.lt.s32.totalorder %s182, 1
      %s186 = scalar_select %p185, %s182, 1
      %s187 = smul.addr %s184, 2
      %s188 = sadd.s32 %s186, %s187
      %s189 = smul.addr %s188, 8
      %s190 = scalar_lea.vmem %s0, %s189
      %p191 = pneg %p49
      %p192 = pneg %p46
      %p193 = scmp.lt.s32.totalorder %s18, 1
      %s194 = scalar_select %p193, %s18, 1
      %s195 = smul.addr %s194, 16
      %s196 = smul.addr %s195, 8
      %s197 = scalar_lea.vmem %s1, %s196
      %p198 = pneg %p75
      %p199 = pneg %p72
      %p200 = scmp.lt.s32.totalorder %s18, 1
      %s201 = scalar_select %p200, %s18, 1
      %s202 = scalar_lea.vmem %s2, %s201
      %p203 = pneg %p101
      %p204 = pneg %p98
      %p205 = pneg %p129
      %p206 = pneg %p126
      %s207 = smul.u32 2, %s19
      %p208 = scmp.lt.s32.totalorder %s18, 1
      %s209 = scalar_select %p208, %s18, 1
      %p210 = scmp.lt.s32.totalorder %s207, 1
      %s211 = scalar_select %p210, %s207, 1
      %s212 = smul.addr %s209, 2
      %s213 = sadd.s32 %s211, %s212
      %s214 = smul.addr %s213, 8
      %s215 = scalar_lea.vmem %s3, %s214
      %s216 = smul.u32 2, %s19
      %p217 = scmp.lt.s32.totalorder %s18, 1
      %s218 = scalar_select %p217, %s18, 1
      %p219 = scmp.lt.s32.totalorder %s216, 1
      %s220 = scalar_select %p219, %s216, 1
      %s221 = smul.addr %s218, 2
      %s222 = sadd.s32 %s220, %s221
      %s223 = smul.addr %s222, 8
      %s224 = scalar_lea.vmem %s0, %s223
      %s225 = smul.u32 2, %s19
      %p226 = scmp.lt.s32.totalorder %s18, 1
      %s227 = scalar_select %p226, %s18, 1
      %s228 = smul.addr %s227, 16
      %s229 = smul.addr %s228, 8
      %s230 = scalar_lea.vmem %s1, %s229
      %p231 = scmp.lt.s32.totalorder %s18, 1
      %s232 = scalar_select %p231, %s18, 1
      %s233 = scalar_lea.vmem %s2, %s232
      %s234 = smul.u32 2, %s19
      %p235 = scmp.lt.s32.totalorder %s18, 1
      %s236 = scalar_select %p235, %s18, 1
      %p237 = scmp.lt.s32.totalorder %s234, 1
      %s238 = scalar_select %p237, %s234, 1
      %s239 = smul.addr %s236, 2
      %s240 = sadd.s32 %s238, %s239
      %s241 = smul.addr %s240, 8
      %s242 = scalar_lea.vmem %s3, %s241
      %s243 = smul.u32 2, %s19
      %v244 = vld [vmem:[%s224] sm:$0xff]
      %v245 = vld [vmem:[%s224 + $0x8] sm:$0x3f]
      %v246 = vld [vmem:[%s230] sm:$0xff]
      %v247 = vld [vmem:[%s230 + $0x8] sm:$0xff]
      %v248 = vld [vmem:[%s230 + $0x10] sm:$0xff]
      %v249 = vld [vmem:[%s230 + $0x18] sm:$0xff]
      %v250 = vld [vmem:[%s230 + $0x20] sm:$0xff]
      %v251 = vld [vmem:[%s230 + $0x28] sm:$0xff]
      %v252 = vld [vmem:[%s230 + $0x30] sm:$0xff]
      %v253 = vld [vmem:[%s230 + $0x38] sm:$0xff]
      %v254 = vld [vmem:[%s230 + $0x40] sm:$0xff]
      %v255 = vld [vmem:[%s230 + $0x48] sm:$0xff]
      %v256 = vld [vmem:[%s230 + $0x50] sm:$0xff]
      %v257 = vld [vmem:[%s230 + $0x58] sm:$0xff]
      %v258 = vld [vmem:[%s230 + $0x60] sm:$0xff]
      %v259 = vld [vmem:[%s230 + $0x68] sm:$0xff]
      %v260 = vld [vmem:[%s230 + $0x70] sm:$0xff]
      %v261 = vld [vmem:[%s230 + $0x78] sm:$0xff]
      %v262 = vld [vmem:[%s233] sm:$0x1]
      %v264 = vlaneseq
      %v265 = vshrl.u32 %v264, 7
      %v266 = vsub.s32 0, %v265
      %v267 = vrot.slane %v262, %v266
      %vm269 = vcmask 261120
      %v271 = vsel %vm269, %v244, 0
      %v274 = vsel %vm269, %v245, 0
      %v277 = vsel %vm269, %v246, 0
      %v280 = vsel %vm269, %v247, 0
      %v283 = vsel %vm269, %v248, 0
      %v286 = vsel %vm269, %v249, 0
      %v289 = vsel %vm269, %v250, 0
      %v292 = vsel %vm269, %v251, 0
      %v295 = vsel %vm269, %v252, 0
      %v298 = vsel %vm269, %v253, 0
      %v301 = vsel %vm269, %v254, 0
      %v304 = vsel %vm269, %v255, 0
      %v307 = vsel %vm269, %v256, 0
      %v310 = vsel %vm269, %v257, 0
      %v313 = vsel %vm269, %v258, 0
      %v316 = vsel %vm269, %v259, 0
      %v319 = vsel %vm269, %v260, 0
      %v322 = vsel %vm269, %v261, 0
      %324 = vmatprep.subr.mxu0 0.0
      %325 = vmatpush1.xpose.msra.mxu0 %v277
      %326 = vmatprep.subr.mxu0 0.0
      %327 = vmatpush1.xpose.msra.mxu0 %v280
      %328 = vmatprep.subr.mxu0 0.0
      %329 = vmatpush1.xpose.msra.mxu0 %v283
      %330 = vmatprep.subr.mxu0 0.0
      %331 = vmatpush1.xpose.msra.mxu0 %v286
      %332 = vmatprep.subr.mxu0 0.0
      %333 = vmatpush1.xpose.msra.mxu0 %v289
      %334 = vmatprep.subr.mxu0 0.0
      %335 = vmatpush1.xpose.msra.mxu0 %v292
      %336 = vmatprep.subr.mxu0 0.0
      %337 = vmatpush1.xpose.msra.mxu0 %v295
      %338 = vmatprep.subr.mxu0 0.0
      %339 = vmatpush1.xpose.msra.mxu0 %v298
      %340 = vmatprep.subr.mxu0 0.0
      %341 = vmatpush1.xpose.msra.mxu0 %v301
      %342 = vmatprep.subr.mxu0 0.0
      %343 = vmatpush1.xpose.msra.mxu0 %v304
      %344 = vmatprep.subr.mxu0 0.0
      %345 = vmatpush1.xpose.msra.mxu0 %v307
      %346 = vmatprep.subr.mxu0 0.0
      %347 = vmatpush1.xpose.msra.mxu0 %v310
      %348 = vmatprep.subr.mxu0 0.0
      %349 = vmatpush1.xpose.msra.mxu0 %v313
      %350 = vmatprep.subr.mxu0 0.0
      %351 = vmatpush1.xpose.msra.mxu0 %v316
      %352 = vmatprep.subr.mxu0 0.0
      %353 = vmatpush1.xpose.msra.mxu0 %v319
      %354 = vmatprep.subr.mxu0 0.0
      %355 = vmatpush1.xpose.msra.mxu0 %v322
      %356 = vmatprep.subr.mxu0 0.0
      %357 = vmatpush1.xpose.msra.mxu0 0.0
      %358 = vmatprep.subr.mxu0 0.0
      %359 = vmatpush1.xpose.msra.mxu0 0.0
      %360 = vmatprep.subr.mxu0 0.0
      %361 = vmatpush1.xpose.msra.mxu0 0.0
      %362 = vmatprep.subr.mxu0 0.0
      %363 = vmatpush1.xpose.msra.mxu0 0.0
      %364 = vmatprep.subr.mxu0 0.0
      %365 = vmatpush1.xpose.msra.mxu0 0.0
      %366 = vmatprep.subr.mxu0 0.0
      %367 = vmatpush1.xpose.msra.mxu0 0.0
      %368 = vmatprep.subr.mxu0 0.0
      %369 = vmatpush1.xpose.msra.mxu0 0.0
      %370 = vmatprep.subr.mxu0 0.0
      %371 = vmatpush1.xpose.msra.mxu0 0.0
      %372 = vmatprep.subr.mxu0 0.0
      %373 = vmatpush1.xpose.msra.mxu0 0.0
      %374 = vmatprep.subr.mxu0 0.0
      %375 = vmatpush1.xpose.msra.mxu0 0.0
      %376 = vmatprep.subr.mxu0 0.0
      %377 = vmatpush1.xpose.msra.mxu0 0.0
      %378 = vmatprep.subr.mxu0 0.0
      %379 = vmatpush1.xpose.msra.mxu0 0.0
      %380 = vmatprep.subr.mxu0 0.0
      %381 = vmatpush1.xpose.msra.mxu0 0.0
      %382 = vmatprep.subr.mxu0 0.0
      %383 = vmatpush1.xpose.msra.mxu0 0.0
      %384 = vmatprep.subr.mxu0 0.0
      %385 = vmatpush1.xpose.msra.mxu0 0.0
      %386 = vmatprep.subr.mxu0 0.0
      %387 = vmatpush1.xpose.msra.mxu0 0.0
      %388 = vmatprep.mubr.f32.mxu0 0.0
      %389 = vmatmul.mubr.f32.gmra.mrb[0].mxu0 %v271
      %v390 = vpop.f32.mrb[0].mxu0
      %v391 = vadd.f32 %v267, %v390
      %v392 = vpop.f32.mrb[0].mxu0
      %393 = vmatprep.mubr.f32.mxu0 0.0
      %394 = vmatmul.mubr.f32.gmra.mrb[0].mxu0 %v274
      %v395 = vpop.f32.mrb[0].mxu0
      %v396 = vadd.f32 %v267, %v395
      %v397 = vpop.f32.mrb[0].mxu0
      %398 = vdwg.mxu0
      %399 = vst [vmem:[%s242] sm:$0xff] %v391
      %400 = vst [vmem:[%s242 + $0x8] sm:$0x3f] %v396
      %s401 = smul.u32 2, %s19
      %p402 = scmp.lt.s32.totalorder %s18, 1
      %s403 = scalar_select %p402, %s18, 1
      %p404 = scmp.lt.s32.totalorder %s401, 1
      %s405 = scalar_select %p404, %s401, 1
      %s406 = smul.addr %s403, 2
      %s407 = sadd.s32 %s405, %s406
      %s408 = smul.addr %s407, 8
      %s409 = scalar_lea.vmem %s3, %s408
      // Predicated region
      $region33: #{tpu_custom_call.1} parent=31 // pred_check
        %p410 = pneg %p126
      $region34: #{tpu_custom_call.1} parent=31 // pred_check_branch
        %412 = sbr.rel (%p410) target = $region36
      $region35: #{tpu_custom_call.1} parent=31 // pred_region
        %s413 = smul.u32 2, %s19
      $region36: #{tpu_custom_call.1} parent=31 // pred_fallthru
        _
    $region32: #{tpu_custom_call.1} parent=5 // pred_fallthru
      _
    %p414 = scmp.le.s32.totalorder 2, %s9
    // Predicated region
    $region37: #{tpu_custom_call.1} parent=5 // pred_check
      %p415 = pneg %p414
    $region38: #{tpu_custom_call.1} parent=5 // pred_check_branch
      %417 = sbr.rel (%p415) target = $region40
    $region39: #{tpu_custom_call.1} parent=5 // pred_region
      %s418 = ssub.s32 %s9, 2
      // Predicated region
      $region41: #{tpu_custom_call.1} parent=39 // pred_check
        %p419 = pneg %p132
      $region42: #{tpu_custom_call.1} parent=39 // pred_check_branch
        %421 = sbr.rel (%p419) target = $region44
      $region43: #{tpu_custom_call.1} parent=39 // pred_region
        %s422 = smul.u32 2, %s21
        %p423 = scmp.lt.s32.totalorder %s20, 1
        %s424 = scalar_select %p423, %s20, 1
        %p425 = scmp.lt.s32.totalorder %s422, 1
        %s426 = scalar_select %p425, %s422, 1
        %s427 = smul.addr %s424, 2
        %s428 = sadd.s32 %s426, %s427
        %s429 = smul.addr %s428, 8
        %s430 = scalar_lea.vmem %s3, %s429
      $region44: #{tpu_custom_call.1} parent=39 // pred_fallthru
        _
    $region40: #{tpu_custom_call.1} parent=5 // pred_fallthru
      _
  $region6: #{tpu_custom_call.1} parent=0 // loop_footer
    %s13 = sadd.s32 1, %s9
  $region7: #{tpu_custom_call.1} parent=0 // loop_footer_branch
    %8 = sbr.rel target = $region3
  $region8: #{tpu_custom_call.1} parent=0 // loop_exit
    _

</llo_original>
